<compile_context>
chip_gen: v5e
topology: v5e:2x2
jax: 0.10.0
libtpu: 0.0.40
codegen_flags: <defaults>
</compile_context>

<pallas_src>
import functools

import jax
import jax.numpy as jnp
from jax import lax
from jax.experimental import pallas as pl
from jax.experimental.pallas import tpu as pltpu


# ----------------------------------------------------------------------------
# helpers
# ----------------------------------------------------------------------------
def _round_up(x, m):
    return ((x + m - 1) // m) * m


def _tpu_generation():
    """Best-effort TPU generation (5 / 6 / 7) from the device kind string."""
    try:
        kind = jax.devices()[0].device_kind.lower()
    except Exception:
        return 6
    for g in (7, 6, 5, 4):
        if f"v{g}" in kind:
            return g
    return 6


def _pick_tile_n(n_nodes, num_steps, hidden_dim, generation):
    """Generation-aware node tile.

    256 fills the v6e/v7x 256-wide MXU, 128 the v5e one; clamp for small
    graphs; ensure >= 2 grid steps on v7x so the ("parallel",) axis shards
    across both TensorCores; keep gi_all + double-buffered mailbox block
    under the scoped-VMEM limit.
    """
    base = 256 if generation >= 6 else 128
    tile = min(base, _round_up(n_nodes, 16))

    if generation >= 7:
        # v7x has 2 TensorCores/chip: a 1-step grid leaves one idle.
        while tile > 16 and (n_nodes + tile - 1) // tile < 2:
            tile = _round_up(tile // 2, 16)

    # VMEM guard (gi_all f32 held live across the whole unrolled recurrence).
    def fits(t):
        gi_all = num_steps * t * 3 * hidden_dim * 4
        mbox = 2 * num_steps * t * hidden_dim * 2        # double-buffered bf16
        weights = 2 * hidden_dim * 3 * hidden_dim * 2
        out = 2 * t * hidden_dim * 4
        return gi_all + mbox + weights + out < 20 * 1024 * 1024

    while tile > 16 and not fits(tile):
        tile = _round_up(tile // 2, 16)
    return tile


# ----------------------------------------------------------------------------
# Pallas kernel: GRU over msg[:, :-1, :] (PyTorch GRU, 1 layer, batch_first)
# followed by LayerNorm on the final hidden state.
# ----------------------------------------------------------------------------
def gru_reduce_kernel(msg_ref, wih_ref, whh_rz_ref, whh_n_ref, bias_i_ref,
                      bhh_n_ref, gamma_ref, beta_ref, out_ref, *,
                      num_steps, hidden_dim, eps, gate_dtype):
    T = num_steps                 # GRU steps (= mailbox length - 1)
    D = hidden_dim
    tile_n = out_ref.shape[0]     # node tile size
    acc = jnp.float32

    wih = wih_ref[...]            # [D, 3D] bf16 (MXU operand)
    whh_rz = whh_rz_ref[...]      # [D, 2D] bf16
    whh_n = whh_n_ref[...]        # [D, D]  bf16

    # ---- Hoisted input projection -------------------------------------------
    # x_t @ W_ih has no dependence on h: one large MXU matmul for all
    # timesteps instead of T tiny ones on the serial chain.  bias_i already
    # contains b_ih plus the r/z parts of b_hh (exact algebraic fold), so no
    # per-step bias broadcast is needed for those gates.
    x_flat = msg_ref[...].reshape(T * tile_n, D)                 # [T*tile_n, D]
    gi_all = jnp.dot(x_flat, wih,
                     preferred_element_type=acc) + bias_i_ref[...]   # f32

    # Only b_hh_n survives into the loop (it sits inside r * (...)); broadcast
    # it once -- JAX does not CSE broadcast_in_dim across unrolled iterations.
    bhn = jnp.broadcast_to(bhh_n_ref[...], (tile_n, D)).astype(acc)

    # ---- Serial GRU recurrence (statically unrolled, T is tiny) --------------
    h = jnp.zeros((tile_n, D), acc)
    for t in range(T):
        gi = gi_all[t * tile_n:(t + 1) * tile_n, :]              # [tile_n, 3D]
        h_mm = h.astype(jnp.bfloat16)
        # Per-gate split: r/z sigmoids (EUP) can issue while the MXU is still
        # producing the n-gate columns; also lowers peak live f32 vregs.
        gh_rz = jnp.dot(h_mm, whh_rz, preferred_element_type=acc)   # [tile_n, 2D]
        gh_n = jnp.dot(h_mm, whh_n, preferred_element_type=acc)     # [tile_n, D]

        # sigmoid(x) = 0.5 * (tanh(0.5 x) + 1): a single EUP op per gate.
        rz_pre = (gi[:, :2 * D] + gh_rz).astype(gate_dtype)
        rz = (jnp.tanh(rz_pre * 0.5) + 1.0) * 0.5
        r = rz[:, :D].astype(acc)
        z = rz[:, D:].astype(acc)

        n_pre = (gi[:, 2 * D:] + r * (gh_n + bhn)).astype(gate_dtype)
        n = jnp.tanh(n_pre).astype(acc)

        # h = (1 - z) * n + z * h  rewritten as  n + z * (h - n).
        h = n + z * (h - n)

    # ---- LayerNorm(hidden_dim), eps = 1e-5 (torch default) -------------------
    # Single-pass mean / E[x^2] so the two lane reduces are independent XLU
    # work.  hidden_dim is a multiple of 128 so the reduce stays cheap and the
    # output store stays unmasked / lane-dense.
    inv_d = 1.0 / D
    s1 = jnp.sum(h, axis=-1, keepdims=True)
    s2 = jnp.sum(h * h, axis=-1, keepdims=True)
    mean = s1 * inv_d
    var = jnp.maximum(s2 * inv_d - mean * mean, 0.0)
    normed = (h - mean) * lax.rsqrt(var + eps)
    out_ref[...] = (normed * gamma_ref[...] + beta_ref[...]).astype(out_ref.dtype)


def gru_reducer_pallas(node_feat, edge_src, w_ih, w_hh, b_ih, b_hh,
                       gamma, beta, *, generation=None, eps=1e-5):
    """GRU mailbox reducer.

    node_feat: [N_src, D] float32 source-node features.
    edge_src:  [N_dst, L] int32 dense per-dst in-edge source ids (mailbox
               column order = DGL mailbox edge order).
    Returns [N_dst, D] float32.
    """
    if generation is None:
        generation = _tpu_generation()
    N, L = edge_src.shape
    D = node_feat.shape[-1]

    if L == 1:
        # length == 1 branch of _gru_reducer: message pass-through
        # (reference applies neither GRU nor LayerNorm in this branch).
        return node_feat[edge_src[:, 0]].astype(jnp.float32)

    # The reference GRU only consumes msg[:, :-1, :]: drop the unused last
    # in-edge at the INDEX level so it never touches HBM as a mailbox row.
    T = L - 1
    tile_n = _pick_tile_n(N, T, D, generation)
    N_pad = _round_up(N, tile_n)

    # Fused mailbox prep: pad the tiny index matrix (padded rows point at
    # node 0 and are discarded on output), cast node features to bf16 once
    # BEFORE the gather, then gather directly into time-major bf16.
    idx_t = edge_src[:, :T].T                                    # [T, N]
    if N_pad != N:
        idx_t = jnp.pad(idx_t, ((0, 0), (0, N_pad - N)))
    node_bf = node_feat.astype(jnp.bfloat16)                     # small cast
    msg_bf = node_bf[idx_t]                                      # [T, N_pad, D]
    # TODO(synk): bigger structural lever -- pull this gather into the kernel
    # via PrefetchScalarGridSpec(num_scalar_prefetch=1) + memory_space=pl.ANY
    # node features, eliminating the materialized mailbox entirely.

    gate_dtype = jnp.bfloat16 if generation >= 6 else jnp.float32

    # Gate order (r, z, n) as in torch.nn.GRU; weights pre-transposed, the
    # recurrent weight split per gate group for the in-loop matmul split.
    wih_t = jnp.transpose(w_ih).astype(jnp.bfloat16)             # [D, 3D]
    whh_rz_t = jnp.transpose(w_hh[:2 * D]).astype(jnp.bfloat16)  # [D, 2D]
    whh_n_t = jnp.transpose(w_hh[2 * D:]).astype(jnp.bfloat16)   # [D, D]
    # Fold b_hh's r/z parts into the hoisted input-projection bias (exact);
    # only b_hh_n must stay inside the recurrence (gated by r).
    bias_i = jnp.concatenate([b_ih[:2 * D] + b_hh[:2 * D], b_ih[2 * D:]])
    bias_i = bias_i.reshape(1, 3 * D).astype(jnp.float32)
    bhh_n = b_hh[2 * D:].reshape(1, D).astype(jnp.float32)
    gamma2 = gamma.reshape(1, D).astype(jnp.float32)
    beta2 = beta.reshape(1, D).astype(jnp.float32)

    out = pl.pallas_call(
        functools.partial(gru_reduce_kernel, num_steps=T, hidden_dim=D,
                          eps=eps, gate_dtype=gate_dtype),
        out_shape=jax.ShapeDtypeStruct((N_pad, D), jnp.float32),
        grid_spec=pltpu.PrefetchScalarGridSpec(
            num_scalar_prefetch=0,
            grid=(N_pad // tile_n,),
            in_specs=[
                pl.BlockSpec((T, tile_n, D), lambda i: (0, i, 0)),
                # Weight / bias / LN-param blocks have constant index_maps, so
                # Pallas keeps them resident across grid steps (no re-DMA).
                pl.BlockSpec((D, 3 * D), lambda i: (0, 0)),
                pl.BlockSpec((D, 2 * D), lambda i: (0, 0)),
                pl.BlockSpec((D, D), lambda i: (0, 0)),
                pl.BlockSpec((1, 3 * D), lambda i: (0, 0)),
                pl.BlockSpec((1, D), lambda i: (0, 0)),
                pl.BlockSpec((1, D), lambda i: (0, 0)),
                pl.BlockSpec((1, D), lambda i: (0, 0)),
            ],
            out_specs=pl.BlockSpec((tile_n, D), lambda i: (i, 0)),
        ),
        compiler_params=pltpu.CompilerParams(
            dimension_semantics=("parallel",)),
    )(msg_bf, wih_t, whh_rz_t, whh_n_t, bias_i, bhh_n, gamma2, beta2)
    return out[:N]


# ----------------------------------------------------------------------------
# GTEConv module (synthetic deterministic parameters; eval mode: dropout = id)
# ----------------------------------------------------------------------------
class GTEConvPallas:
    def __init__(self, hidden_dim, num_heads, vocab_size, subtoken, key):
        self.hidden_dim = hidden_dim
        self.subtoken = subtoken
        self.generation = _tpu_generation()
        k1, k2, k3, k4, k5 = jax.random.split(key, 5)

        # nn.Embedding + kaiming_normal_ : std = sqrt(2 / fan_in), fan_in = D
        self.embedding = (jax.random.normal(k1, (vocab_size, hidden_dim),
                                            dtype=jnp.float32)
                          * jnp.sqrt(2.0 / hidden_dim))

        # nn.GRU default reset: U(-1/sqrt(D), 1/sqrt(D)), gate order (r, z, n)
        bound = 1.0 / jnp.sqrt(jnp.float32(hidden_dim))
        self.w_ih = jax.random.uniform(k2, (3 * hidden_dim, hidden_dim),
                                       minval=-bound, maxval=bound,
                                       dtype=jnp.float32)
        self.w_hh = jax.random.uniform(k3, (3 * hidden_dim, hidden_dim),
                                       minval=-bound, maxval=bound,
                                       dtype=jnp.float32)
        self.b_ih = jax.random.uniform(k4, (3 * hidden_dim,),
                                       minval=-bound, maxval=bound,
                                       dtype=jnp.float32)
        self.b_hh = jax.random.uniform(k5, (3 * hidden_dim,),
                                       minval=-bound, maxval=bound,
                                       dtype=jnp.float32)

        # nn.LayerNorm default init
        self.ln_gamma = jnp.ones((hidden_dim,), jnp.float32)
        self.ln_beta = jnp.zeros((hidden_dim,), jnp.float32)
        # TODO(synk): hidden_combine_layer / activation / residual are unused
        # in the reference forward pass and are therefore not instantiated.
        # TODO(synk): lstm_n_layers > 1 (stacked GRU) not implemented.

    def _embed(self, token_ids):
        emb = self.embedding[token_ids]            # [N, S, D]
        if self.subtoken:
            return jnp.mean(emb, axis=1)           # [N, D]
        return emb[:, 0, :]                        # squeeze(1)

    def forward(self, blocks):
        """Each synthetic block is a dict:
             'token_ids': int32 [N_nodes, S]   (src tokens for block 0,
                                                dst tokens for later blocks)
             'edge_src' : int32 [N_dst, L]     dense per-dst in-edge src ids
        """
        rst_features = None
        for idx, block in enumerate(blocks):
            feat = self._embed(block["token_ids"])            # feat_drop = id
            if idx == 0:
                node_feat = feat
            else:
                node_feat = jnp.concatenate([feat, rst_features], axis=0)
            # message_func = copy_u -> dense mailbox; the gather / cast / pad
            # fusion lives inside gru_reducer_pallas (reduce_func).
            rst_features = gru_reducer_pallas(
                node_feat, block["edge_src"], self.w_ih, self.w_hh,
                self.b_ih, self.b_hh, self.ln_gamma, self.ln_beta,
                generation=self.generation)
        return rst_features, None


# ----------------------------------------------------------------------------
if __name__ == "__main__":
    key = jax.random.PRNGKey(0)
    kp, kt1, ke1, kt2, ke2 = jax.random.split(key, 5)

    hidden_dim = 128     # lane-aligned hidden size (keep a multiple of 128)
    num_heads = 4
    vocab_size = 50
    subtoken = True
    n_subtok = 3

    model = GTEConvPallas(hidden_dim, num_heads, vocab_size, subtoken, kp)

    # Block 0 (first layer): 24 src nodes, 16 dst nodes, 5 in-edges each.
    n1_src, n1_dst, L1 = 24, 16, 5
    block0 = {
        "token_ids": jax.random.randint(kt1, (n1_src, n_subtok), 0, vocab_size),
        "edge_src": jax.random.randint(ke1, (n1_dst, L1), 0, n1_src),
    }
    # Block 1: dst tokens embedded and concatenated with previous rst features
    # (src set size = n2_dst + n1_dst), 8 dst nodes, 4 in-edges each.
    n2_dst, L2 = 8, 4
    block1 = {
        "token_ids": jax.random.randint(kt2, (n2_dst, n_subtok), 0, vocab_size),
        "edge_src": jax.random.randint(ke2, (n2_dst, L2), 0, n2_dst + n1_dst),
    }

    rst, attn = model.forward([block0, block1])
    rst = jax.block_until_ready(rst)

    assert rst.shape == (n2_dst, hidden_dim), rst.shape
    assert bool(jnp.all(jnp.isfinite(rst)))
    print("KERNEL_OK")
</pallas_src>

<mosaic_0001>
module attributes {stable_mosaic.version = 11 : i64} {
  func.func @gru_reduce_kernel(%arg0: i32, %arg1: memref<4x16x128xbf16, #tpu.memory_space<vmem>>, %arg2: memref<128x384xbf16, #tpu.memory_space<vmem>>, %arg3: memref<128x256xbf16, #tpu.memory_space<vmem>>, %arg4: memref<128x128xbf16, #tpu.memory_space<vmem>>, %arg5: memref<1x384xf32, #tpu.memory_space<vmem>>, %arg6: memref<1x128xf32, #tpu.memory_space<vmem>>, %arg7: memref<1x128xf32, #tpu.memory_space<vmem>>, %arg8: memref<1x128xf32, #tpu.memory_space<vmem>>, %arg9: memref<16x128xf32, #tpu.memory_space<vmem>>) attributes {dimension_semantics = [#tpu.dimension_semantics<parallel>], iteration_bounds = array<i64: 1>, scalar_prefetch = 0 : i64, scratch_operands = 0 : i64, tpu.core_type = #tpu.core_type<tc>, window_params = [{transform_indices = @transform_0, window_bounds = array<i64: 4, 16, 128>}, {pipeline_mode = #tpu.pipeline_mode<synchronous>, transform_indices = @transform_1, window_bounds = array<i64: 128, 384>}, {pipeline_mode = #tpu.pipeline_mode<synchronous>, transform_indices = @transform_2, window_bounds = array<i64: 128, 256>}, {pipeline_mode = #tpu.pipeline_mode<synchronous>, transform_indices = @transform_3, window_bounds = array<i64: 128, 128>}, {pipeline_mode = #tpu.pipeline_mode<synchronous>, transform_indices = @transform_4, window_bounds = array<i64: 1, 384>}, {pipeline_mode = #tpu.pipeline_mode<synchronous>, transform_indices = @transform_5, window_bounds = array<i64: 1, 128>}, {pipeline_mode = #tpu.pipeline_mode<synchronous>, transform_indices = @transform_6, window_bounds = array<i64: 1, 128>}, {pipeline_mode = #tpu.pipeline_mode<synchronous>, transform_indices = @transform_7, window_bounds = array<i64: 1, 128>}, {transform_indices = @transform_8, window_bounds = array<i64: 16, 128>}]} {
    %c0 = arith.constant 0 : index
    %c0_0 = arith.constant 0 : index
    %0 = vector.load %arg2[%c0, %c0_0] : memref<128x384xbf16, #tpu.memory_space<vmem>>, vector<128x384xbf16>
    %c0_1 = arith.constant 0 : index
    %c0_2 = arith.constant 0 : index
    %1 = vector.load %arg3[%c0_1, %c0_2] : memref<128x256xbf16, #tpu.memory_space<vmem>>, vector<128x256xbf16>
    %c0_3 = arith.constant 0 : index
    %c0_4 = arith.constant 0 : index
    %2 = vector.load %arg4[%c0_3, %c0_4] : memref<128x128xbf16, #tpu.memory_space<vmem>>, vector<128x128xbf16>
    %c0_5 = arith.constant 0 : index
    %c0_6 = arith.constant 0 : index
    %c0_7 = arith.constant 0 : index
    %3 = vector.load %arg1[%c0_5, %c0_6, %c0_7] : memref<4x16x128xbf16, #tpu.memory_space<vmem>>, vector<4x16x128xbf16>
    %4 = vector.shape_cast %3 : vector<4x16x128xbf16> to vector<64x128xbf16>
    %cst = arith.constant dense<0.000000e+00> : vector<64x384xf32>
    %5 = tpu.matmul %4, %0, %cst {dimension_numbers = #tpu.dot_dimension_numbers<[1], [0], [0], [1], [0, 0, 1, 1], [], []>} : vector<64x128xbf16>, vector<128x384xbf16>, vector<64x384xf32> -> vector<64x384xf32>
    %c0_8 = arith.constant 0 : index
    %c0_9 = arith.constant 0 : index
    %6 = vector.load %arg5[%c0_8, %c0_9] : memref<1x384xf32, #tpu.memory_space<vmem>>, vector<1x384xf32>
    %7 = vector.broadcast %6 : vector<1x384xf32> to vector<64x384xf32>
    %8 = arith.addf %5, %7 : vector<64x384xf32>
    %c0_10 = arith.constant 0 : index
    %c0_11 = arith.constant 0 : index
    %9 = vector.load %arg6[%c0_10, %c0_11] : memref<1x128xf32, #tpu.memory_space<vmem>>, vector<1x128xf32>
    %10 = vector.shape_cast %9 : vector<1x128xf32> to vector<1x128xf32>
    %11 = vector.broadcast %10 : vector<1x128xf32> to vector<16x128xf32>
    %cst_12 = arith.constant 0.000000e+00 : f32
    %12 = vector.broadcast %cst_12 : f32 to vector<16x128xf32>
    %13 = vector.extract_strided_slice %8 {offsets = [0, 0], sizes = [16, 384], strides = [1, 1]} : vector<64x384xf32> to vector<16x384xf32>
    %14 = arith.truncf %12 : vector<16x128xf32> to vector<16x128xbf16>
    %cst_13 = arith.constant dense<0.000000e+00> : vector<16x256xf32>
    %15 = tpu.matmul %14, %1, %cst_13 {dimension_numbers = #tpu.dot_dimension_numbers<[1], [0], [0], [1], [0, 0, 1, 1], [], []>} : vector<16x128xbf16>, vector<128x256xbf16>, vector<16x256xf32> -> vector<16x256xf32>
    %cst_14 = arith.constant dense<0.000000e+00> : vector<16x128xf32>
    %16 = tpu.matmul %14, %2, %cst_14 {dimension_numbers = #tpu.dot_dimension_numbers<[1], [0], [0], [1], [0, 0, 1, 1], [], []>} : vector<16x128xbf16>, vector<128x128xbf16>, vector<16x128xf32> -> vector<16x128xf32>
    %17 = vector.extract_strided_slice %13 {offsets = [0, 0], sizes = [16, 256], strides = [1, 1]} : vector<16x384xf32> to vector<16x256xf32>
    %18 = arith.addf %17, %15 : vector<16x256xf32>
    %19 = arith.truncf %18 : vector<16x256xf32> to vector<16x256xbf16>
    %cst_15 = arith.constant 5.000000e-01 : bf16
    %20 = vector.broadcast %cst_15 : bf16 to vector<16x256xbf16>
    %21 = arith.mulf %19, %20 : vector<16x256xbf16>
    %22 = math.tanh %21 : vector<16x256xbf16>
    %cst_16 = arith.constant 1.000000e+00 : bf16
    %23 = vector.broadcast %cst_16 : bf16 to vector<16x256xbf16>
    %24 = arith.addf %22, %23 : vector<16x256xbf16>
    %cst_17 = arith.constant 5.000000e-01 : bf16
    %25 = vector.broadcast %cst_17 : bf16 to vector<16x256xbf16>
    %26 = arith.mulf %24, %25 : vector<16x256xbf16>
    %27 = vector.extract_strided_slice %26 {offsets = [0, 0], sizes = [16, 128], strides = [1, 1]} : vector<16x256xbf16> to vector<16x128xbf16>
    %28 = arith.extf %27 : vector<16x128xbf16> to vector<16x128xf32>
    %29 = vector.extract_strided_slice %26 {offsets = [0, 128], sizes = [16, 128], strides = [1, 1]} : vector<16x256xbf16> to vector<16x128xbf16>
    %30 = arith.extf %29 : vector<16x128xbf16> to vector<16x128xf32>
    %31 = vector.extract_strided_slice %13 {offsets = [0, 256], sizes = [16, 128], strides = [1, 1]} : vector<16x384xf32> to vector<16x128xf32>
    %32 = arith.addf %16, %11 : vector<16x128xf32>
    %33 = arith.mulf %28, %32 : vector<16x128xf32>
    %34 = arith.addf %31, %33 : vector<16x128xf32>
    %35 = arith.truncf %34 : vector<16x128xf32> to vector<16x128xbf16>
    %36 = math.tanh %35 : vector<16x128xbf16>
    %37 = arith.extf %36 : vector<16x128xbf16> to vector<16x128xf32>
    %38 = arith.subf %12, %37 : vector<16x128xf32>
    %39 = arith.mulf %30, %38 : vector<16x128xf32>
    %40 = arith.addf %37, %39 : vector<16x128xf32>
    %41 = vector.extract_strided_slice %8 {offsets = [16, 0], sizes = [16, 384], strides = [1, 1]} : vector<64x384xf32> to vector<16x384xf32>
    %42 = arith.truncf %40 : vector<16x128xf32> to vector<16x128xbf16>
    %cst_18 = arith.constant dense<0.000000e+00> : vector<16x256xf32>
    %43 = tpu.matmul %42, %1, %cst_18 {dimension_numbers = #tpu.dot_dimension_numbers<[1], [0], [0], [1], [0, 0, 1, 1], [], []>} : vector<16x128xbf16>, vector<128x256xbf16>, vector<16x256xf32> -> vector<16x256xf32>
    %cst_19 = arith.constant dense<0.000000e+00> : vector<16x128xf32>
    %44 = tpu.matmul %42, %2, %cst_19 {dimension_numbers = #tpu.dot_dimension_numbers<[1], [0], [0], [1], [0, 0, 1, 1], [], []>} : vector<16x128xbf16>, vector<128x128xbf16>, vector<16x128xf32> -> vector<16x128xf32>
    %45 = vector.extract_strided_slice %41 {offsets = [0, 0], sizes = [16, 256], strides = [1, 1]} : vector<16x384xf32> to vector<16x256xf32>
    %46 = arith.addf %45, %43 : vector<16x256xf32>
    %47 = arith.truncf %46 : vector<16x256xf32> to vector<16x256xbf16>
    %cst_20 = arith.constant 5.000000e-01 : bf16
    %48 = vector.broadcast %cst_20 : bf16 to vector<16x256xbf16>
    %49 = arith.mulf %47, %48 : vector<16x256xbf16>
    %50 = math.tanh %49 : vector<16x256xbf16>
    %cst_21 = arith.constant 1.000000e+00 : bf16
    %51 = vector.broadcast %cst_21 : bf16 to vector<16x256xbf16>
    %52 = arith.addf %50, %51 : vector<16x256xbf16>
    %cst_22 = arith.constant 5.000000e-01 : bf16
    %53 = vector.broadcast %cst_22 : bf16 to vector<16x256xbf16>
    %54 = arith.mulf %52, %53 : vector<16x256xbf16>
    %55 = vector.extract_strided_slice %54 {offsets = [0, 0], sizes = [16, 128], strides = [1, 1]} : vector<16x256xbf16> to vector<16x128xbf16>
    %56 = arith.extf %55 : vector<16x128xbf16> to vector<16x128xf32>
    %57 = vector.extract_strided_slice %54 {offsets = [0, 128], sizes = [16, 128], strides = [1, 1]} : vector<16x256xbf16> to vector<16x128xbf16>
    %58 = arith.extf %57 : vector<16x128xbf16> to vector<16x128xf32>
    %59 = vector.extract_strided_slice %41 {offsets = [0, 256], sizes = [16, 128], strides = [1, 1]} : vector<16x384xf32> to vector<16x128xf32>
    %60 = arith.addf %44, %11 : vector<16x128xf32>
    %61 = arith.mulf %56, %60 : vector<16x128xf32>
    %62 = arith.addf %59, %61 : vector<16x128xf32>
    %63 = arith.truncf %62 : vector<16x128xf32> to vector<16x128xbf16>
    %64 = math.tanh %63 : vector<16x128xbf16>
    %65 = arith.extf %64 : vector<16x128xbf16> to vector<16x128xf32>
    %66 = arith.subf %40, %65 : vector<16x128xf32>
    %67 = arith.mulf %58, %66 : vector<16x128xf32>
    %68 = arith.addf %65, %67 : vector<16x128xf32>
    %69 = vector.extract_strided_slice %8 {offsets = [32, 0], sizes = [16, 384], strides = [1, 1]} : vector<64x384xf32> to vector<16x384xf32>
    %70 = arith.truncf %68 : vector<16x128xf32> to vector<16x128xbf16>
    %cst_23 = arith.constant dense<0.000000e+00> : vector<16x256xf32>
    %71 = tpu.matmul %70, %1, %cst_23 {dimension_numbers = #tpu.dot_dimension_numbers<[1], [0], [0], [1], [0, 0, 1, 1], [], []>} : vector<16x128xbf16>, vector<128x256xbf16>, vector<16x256xf32> -> vector<16x256xf32>
    %cst_24 = arith.constant dense<0.000000e+00> : vector<16x128xf32>
    %72 = tpu.matmul %70, %2, %cst_24 {dimension_numbers = #tpu.dot_dimension_numbers<[1], [0], [0], [1], [0, 0, 1, 1], [], []>} : vector<16x128xbf16>, vector<128x128xbf16>, vector<16x128xf32> -> vector<16x128xf32>
    %73 = vector.extract_strided_slice %69 {offsets = [0, 0], sizes = [16, 256], strides = [1, 1]} : vector<16x384xf32> to vector<16x256xf32>
    %74 = arith.addf %73, %71 : vector<16x256xf32>
    %75 = arith.truncf %74 : vector<16x256xf32> to vector<16x256xbf16>
    %cst_25 = arith.constant 5.000000e-01 : bf16
    %76 = vector.broadcast %cst_25 : bf16 to vector<16x256xbf16>
    %77 = arith.mulf %75, %76 : vector<16x256xbf16>
    %78 = math.tanh %77 : vector<16x256xbf16>
    %cst_26 = arith.constant 1.000000e+00 : bf16
    %79 = vector.broadcast %cst_26 : bf16 to vector<16x256xbf16>
    %80 = arith.addf %78, %79 : vector<16x256xbf16>
    %cst_27 = arith.constant 5.000000e-01 : bf16
    %81 = vector.broadcast %cst_27 : bf16 to vector<16x256xbf16>
    %82 = arith.mulf %80, %81 : vector<16x256xbf16>
    %83 = vector.extract_strided_slice %82 {offsets = [0, 0], sizes = [16, 128], strides = [1, 1]} : vector<16x256xbf16> to vector<16x128xbf16>
    %84 = arith.extf %83 : vector<16x128xbf16> to vector<16x128xf32>
    %85 = vector.extract_strided_slice %82 {offsets = [0, 128], sizes = [16, 128], strides = [1, 1]} : vector<16x256xbf16> to vector<16x128xbf16>
    %86 = arith.extf %85 : vector<16x128xbf16> to vector<16x128xf32>
    %87 = vector.extract_strided_slice %69 {offsets = [0, 256], sizes = [16, 128], strides = [1, 1]} : vector<16x384xf32> to vector<16x128xf32>
    %88 = arith.addf %72, %11 : vector<16x128xf32>
    %89 = arith.mulf %84, %88 : vector<16x128xf32>
    %90 = arith.addf %87, %89 : vector<16x128xf32>
    %91 = arith.truncf %90 : vector<16x128xf32> to vector<16x128xbf16>
    %92 = math.tanh %91 : vector<16x128xbf16>
    %93 = arith.extf %92 : vector<16x128xbf16> to vector<16x128xf32>
    %94 = arith.subf %68, %93 : vector<16x128xf32>
    %95 = arith.mulf %86, %94 : vector<16x128xf32>
    %96 = arith.addf %93, %95 : vector<16x128xf32>
    %97 = vector.extract_strided_slice %8 {offsets = [48, 0], sizes = [16, 384], strides = [1, 1]} : vector<64x384xf32> to vector<16x384xf32>
    %98 = arith.truncf %96 : vector<16x128xf32> to vector<16x128xbf16>
    %cst_28 = arith.constant dense<0.000000e+00> : vector<16x256xf32>
    %99 = tpu.matmul %98, %1, %cst_28 {dimension_numbers = #tpu.dot_dimension_numbers<[1], [0], [0], [1], [0, 0, 1, 1], [], []>} : vector<16x128xbf16>, vector<128x256xbf16>, vector<16x256xf32> -> vector<16x256xf32>
    %cst_29 = arith.constant dense<0.000000e+00> : vector<16x128xf32>
    %100 = tpu.matmul %98, %2, %cst_29 {dimension_numbers = #tpu.dot_dimension_numbers<[1], [0], [0], [1], [0, 0, 1, 1], [], []>} : vector<16x128xbf16>, vector<128x128xbf16>, vector<16x128xf32> -> vector<16x128xf32>
    %101 = vector.extract_strided_slice %97 {offsets = [0, 0], sizes = [16, 256], strides = [1, 1]} : vector<16x384xf32> to vector<16x256xf32>
    %102 = arith.addf %101, %99 : vector<16x256xf32>
    %103 = arith.truncf %102 : vector<16x256xf32> to vector<16x256xbf16>
    %cst_30 = arith.constant 5.000000e-01 : bf16
    %104 = vector.broadcast %cst_30 : bf16 to vector<16x256xbf16>
    %105 = arith.mulf %103, %104 : vector<16x256xbf16>
    %106 = math.tanh %105 : vector<16x256xbf16>
    %cst_31 = arith.constant 1.000000e+00 : bf16
    %107 = vector.broadcast %cst_31 : bf16 to vector<16x256xbf16>
    %108 = arith.addf %106, %107 : vector<16x256xbf16>
    %cst_32 = arith.constant 5.000000e-01 : bf16
    %109 = vector.broadcast %cst_32 : bf16 to vector<16x256xbf16>
    %110 = arith.mulf %108, %109 : vector<16x256xbf16>
    %111 = vector.extract_strided_slice %110 {offsets = [0, 0], sizes = [16, 128], strides = [1, 1]} : vector<16x256xbf16> to vector<16x128xbf16>
    %112 = arith.extf %111 : vector<16x128xbf16> to vector<16x128xf32>
    %113 = vector.extract_strided_slice %110 {offsets = [0, 128], sizes = [16, 128], strides = [1, 1]} : vector<16x256xbf16> to vector<16x128xbf16>
    %114 = arith.extf %113 : vector<16x128xbf16> to vector<16x128xf32>
    %115 = vector.extract_strided_slice %97 {offsets = [0, 256], sizes = [16, 128], strides = [1, 1]} : vector<16x384xf32> to vector<16x128xf32>
    %116 = arith.addf %100, %11 : vector<16x128xf32>
    %117 = arith.mulf %112, %116 : vector<16x128xf32>
    %118 = arith.addf %115, %117 : vector<16x128xf32>
    %119 = arith.truncf %118 : vector<16x128xf32> to vector<16x128xbf16>
    %120 = math.tanh %119 : vector<16x128xbf16>
    %121 = arith.extf %120 : vector<16x128xbf16> to vector<16x128xf32>
    %122 = arith.subf %96, %121 : vector<16x128xf32>
    %123 = arith.mulf %114, %122 : vector<16x128xf32>
    %124 = arith.addf %121, %123 : vector<16x128xf32>
    %cst_33 = arith.constant dense<0.000000e+00> : vector<16xf32>
    %125 = vector.multi_reduction <add>, %124, %cst_33 [1] : vector<16x128xf32> to vector<16xf32>
    %126 = vector.shape_cast %125 : vector<16xf32> to vector<16x1xf32>
    %127 = arith.mulf %124, %124 : vector<16x128xf32>
    %cst_34 = arith.constant dense<0.000000e+00> : vector<16xf32>
    %128 = vector.multi_reduction <add>, %127, %cst_34 [1] : vector<16x128xf32> to vector<16xf32>
    %129 = vector.shape_cast %128 : vector<16xf32> to vector<16x1xf32>
    %cst_35 = arith.constant 7.812500e-03 : f32
    %130 = vector.broadcast %cst_35 : f32 to vector<16x1xf32>
    %131 = arith.mulf %126, %130 : vector<16x1xf32>
    %cst_36 = arith.constant 7.812500e-03 : f32
    %132 = vector.broadcast %cst_36 : f32 to vector<16x1xf32>
    %133 = arith.mulf %129, %132 : vector<16x1xf32>
    %134 = arith.mulf %131, %131 : vector<16x1xf32>
    %135 = arith.subf %133, %134 : vector<16x1xf32>
    %cst_37 = arith.constant 0.000000e+00 : f32
    %136 = vector.broadcast %cst_37 : f32 to vector<16x1xf32>
    %137 = arith.maximumf %135, %136 : vector<16x1xf32>
    %138 = vector.broadcast %131 : vector<16x1xf32> to vector<16x128xf32>
    %139 = arith.subf %124, %138 : vector<16x128xf32>
    %cst_38 = arith.constant 9.99999974E-6 : f32
    %140 = vector.broadcast %cst_38 : f32 to vector<16x1xf32>
    %141 = arith.addf %137, %140 : vector<16x1xf32>
    %142 = math.rsqrt %141 : vector<16x1xf32>
    %143 = vector.broadcast %142 : vector<16x1xf32> to vector<16x128xf32>
    %144 = arith.mulf %139, %143 : vector<16x128xf32>
    %c0_39 = arith.constant 0 : index
    %c0_40 = arith.constant 0 : index
    %145 = vector.load %arg7[%c0_39, %c0_40] : memref<1x128xf32, #tpu.memory_space<vmem>>, vector<1x128xf32>
    %146 = vector.broadcast %145 : vector<1x128xf32> to vector<16x128xf32>
    %147 = arith.mulf %144, %146 : vector<16x128xf32>
    %c0_41 = arith.constant 0 : index
    %c0_42 = arith.constant 0 : index
    %148 = vector.load %arg8[%c0_41, %c0_42] : memref<1x128xf32, #tpu.memory_space<vmem>>, vector<1x128xf32>
    %149 = vector.broadcast %148 : vector<1x128xf32> to vector<16x128xf32>
    %150 = arith.addf %147, %149 : vector<16x128xf32>
    %c0_43 = arith.constant 0 : index
    %c0_44 = arith.constant 0 : index
    %151 = vector.load %arg9[%c0_43, %c0_44] : memref<16x128xf32, #tpu.memory_space<vmem>>, vector<16x128xf32>
    tpu.vector_store %arg9[%c0_43, %c0_44], %150 {strides = array<i32>} : memref<16x128xf32, #tpu.memory_space<vmem>>, vector<16x128xf32>,
    return
  }
  func.func @transform_0(%arg0: i32) -> (i32, i32, i32) {
    %c0_i32 = arith.constant 0 : i32
    %c0_i32_0 = arith.constant 0 : i32
    %c0_i32_1 = arith.constant 0 : i32
    return %c0_i32, %arg0, %c0_i32_0 : i32, i32, i32
  }
  func.func @transform_1(%arg0: i32) -> (i32, i32) {
    %c0_i32 = arith.constant 0 : i32
    %c0_i32_0 = arith.constant 0 : i32
    %c0_i32_1 = arith.constant 0 : i32
    return %c0_i32, %c0_i32_0 : i32, i32
  }
  func.func @transform_2(%arg0: i32) -> (i32, i32) {
    %c0_i32 = arith.constant 0 : i32
    %c0_i32_0 = arith.constant 0 : i32
    %c0_i32_1 = arith.constant 0 : i32
    return %c0_i32, %c0_i32_0 : i32, i32
  }
  func.func @transform_3(%arg0: i32) -> (i32, i32) {
    %c0_i32 = arith.constant 0 : i32
    %c0_i32_0 = arith.constant 0 : i32
    %c0_i32_1 = arith.constant 0 : i32
    return %c0_i32, %c0_i32_0 : i32, i32
  }
  func.func @transform_4(%arg0: i32) -> (i32, i32) {
    %c0_i32 = arith.constant 0 : i32
    %c0_i32_0 = arith.constant 0 : i32
    %c0_i32_1 = arith.constant 0 : i32
    return %c0_i32, %c0_i32_0 : i32, i32
  }
  func.func @transform_5(%arg0: i32) -> (i32, i32) {
    %c0_i32 = arith.constant 0 : i32
    %c0_i32_0 = arith.constant 0 : i32
    %c0_i32_1 = arith.constant 0 : i32
    return %c0_i32, %c0_i32_0 : i32, i32
  }
  func.func @transform_6(%arg0: i32) -> (i32, i32) {
    %c0_i32 = arith.constant 0 : i32
    %c0_i32_0 = arith.constant 0 : i32
    %c0_i32_1 = arith.constant 0 : i32
    return %c0_i32, %c0_i32_0 : i32, i32
  }
  func.func @transform_7(%arg0: i32) -> (i32, i32) {
    %c0_i32 = arith.constant 0 : i32
    %c0_i32_0 = arith.constant 0 : i32
    %c0_i32_1 = arith.constant 0 : i32
    return %c0_i32, %c0_i32_0 : i32, i32
  }
  func.func @transform_8(%arg0: i32) -> (i32, i32) {
    %c0_i32 = arith.constant 0 : i32
    %c0_i32_0 = arith.constant 0 : i32
    return %arg0, %c0_i32 : i32, i32
  }
}

</mosaic_0001>

<llo_original>
// kernel: tpu_custom_call.1
$region0: #{tpu_custom_call.1}
  #allocation0 [shape = 'u32[]', space=smem, size = 0x4, offset = 0x4, fixed_abs, tag = 'smem constant byte address 0x4 - core index']
  #allocation1 [shape = 'u32[72,128]{1,0:T(1,128)}', space=vmem, size = 0x9000, scoped, tag = 'internal scratch']
  %s0 = inlined_call_operand.hbm [shape: bf16[4,16,128], index: 0, kind: input, shape index: {}]
  %s1 = inlined_call_operand.hbm [shape: bf16[128,384], index: 1, kind: input, shape index: {}]
  %s2 = inlined_call_operand.hbm [shape: bf16[128,256], index: 2, kind: input, shape index: {}]
  %s3 = inlined_call_operand.hbm [shape: bf16[128,128], index: 3, kind: input, shape index: {}]
  %s4 = inlined_call_operand.vmem [shape: f32[1,384], index: 4, kind: input, shape index: {}]
  %s5 = inlined_call_operand.vmem [shape: f32[1,128], index: 5, kind: input, shape index: {}]
  %s6 = inlined_call_operand.vmem [shape: f32[1,128], index: 6, kind: input, shape index: {}]
  %s7 = inlined_call_operand.vmem [shape: f32[1,128], index: 7, kind: input, shape index: {}]
  %s8 = inlined_call_operand.hbm [shape: f32[16,128], index: 8, kind: output, shape index: {}]
  %s9 = sld [smem:[#allocation0]]
  $region58: #{tpu_custom_call.1} parent=0
    _
  %s11 = ssub.s32 1, %s9
  %s12 = scalar_select 0, %s11, %s9
  $region1: #{tpu_custom_call.1} parent=0
    #allocation2 [shape = 'u8[16384]{0}', space=vmem, size = 0x4000, scoped, tag = 'input window, operand 0, single buffered']
    #allocation3 [shape = 's32[1]{0}', space=sflag, size = 0x4, scoped, tag = 'scoped memory for tpu_custom_call.1']
    #allocation4 [shape = 's32[1]{0}', space=sflag, size = 0x4, scoped, tag = 'scoped memory for tpu_custom_call.1']
    #allocation5 [shape = 'u8[98304]{0}', space=vmem, size = 0x18000, scoped, tag = 'input window, operand 1, single buffered']
    #allocation6 [shape = 's32[1]{0}', space=sflag, size = 0x4, scoped, tag = 'scoped memory for tpu_custom_call.1']
    #allocation7 [shape = 'u8[65536]{0}', space=vmem, size = 0x10000, scoped, tag = 'input window, operand 2, single buffered']
    #allocation8 [shape = 'u8[32768]{0}', space=vmem, size = 0x8000, scoped, tag = 'input window, operand 3, single buffered']
    #allocation9 [shape = 's32[1]{0}', space=sflag, size = 0x4, scoped, tag = 'scoped memory for tpu_custom_call.1']
    #allocation10 [shape = 'u8[8192]{0}', space=vmem, size = 0x2000, scoped, tag = 'output window, operand 0, single buffered']
    %13 = vsyncpa [#allocation3], 0
    %14 = vsyncpa [#allocation6], 0
    %15 = vsyncpa [#allocation9], 0
    %16 = vsyncpa [#allocation4], 0
    // Predicated region
    $region2: #{tpu_custom_call.1} parent=1 // pred_check
      _
    $region3: #{tpu_custom_call.1} parent=1 // pred_check_branch
      %18 = sbr.rel (0) target = $region5
    $region4: #{tpu_custom_call.1} parent=1 // pred_region
      %20 = vsyncadd [#allocation3], 0
      %s21 = sshll.u32 %s0, 4
      %s22 = int_to_ptr.hbm [resolvable:$true] %s21
      %s23 = sshll.u32 [#allocation2], 4
      %s24 = int_to_ptr.vmem [resolvable:$true] %s23
      %29 = dma.hbm_to_vmem [thread:$0]  %s22, 512, %s24, [#allocation3], 64, 64, 4
    $region5: #{tpu_custom_call.1} parent=1 // pred_fallthru
      _
    // Predicated region
    $region6: #{tpu_custom_call.1} parent=1 // pred_check
      _
    $region7: #{tpu_custom_call.1} parent=1 // pred_check_branch
      %31 = sbr.rel (0) target = $region9
    $region8: #{tpu_custom_call.1} parent=1 // pred_region
      %33 = vsyncadd [#allocation6], 0
      %s34 = sshll.u32 %s1, 4
      %s35 = int_to_ptr.hbm [resolvable:$true] %s34
      %s36 = sshll.u32 [#allocation5], 4
      %s37 = int_to_ptr.vmem [resolvable:$true] %s36
      %42 = dma.hbm_to_vmem [thread:$0]  %s35, 3072, %s37, [#allocation6], 192, 192, 12
    $region9: #{tpu_custom_call.1} parent=1 // pred_fallthru
      _
    // Predicated region
    $region10: #{tpu_custom_call.1} parent=1 // pred_check
      _
    $region11: #{tpu_custom_call.1} parent=1 // pred_check_branch
      %44 = sbr.rel (0) target = $region13
    $region12: #{tpu_custom_call.1} parent=1 // pred_region
      %46 = vsyncadd [#allocation6], 0
      %s47 = sshll.u32 %s2, 4
      %s48 = int_to_ptr.hbm [resolvable:$true] %s47
      %s49 = sshll.u32 [#allocation7], 4
      %s50 = int_to_ptr.vmem [resolvable:$true] %s49
      %55 = dma.hbm_to_vmem [thread:$0]  %s48, 2048, %s50, [#allocation6], 128, 128, 8
    $region13: #{tpu_custom_call.1} parent=1 // pred_fallthru
      _
    // Predicated region
    $region14: #{tpu_custom_call.1} parent=1 // pred_check
      _
    $region15: #{tpu_custom_call.1} parent=1 // pred_check_branch
      %57 = sbr.rel (0) target = $region17
    $region16: #{tpu_custom_call.1} parent=1 // pred_region
      %59 = vsyncadd [#allocation9], 0
      %s60 = sshll.u32 %s3, 4
      %s61 = int_to_ptr.hbm [resolvable:$true] %s60
      %s62 = sshll.u32 [#allocation8], 4
      %s63 = int_to_ptr.vmem [resolvable:$true] %s62
      %68 = dma.hbm_to_vmem [thread:$0]  %s61, 1024, %s63, [#allocation9], 64, 64, 4
    $region17: #{tpu_custom_call.1} parent=1 // pred_fallthru
      _
    // Predicated region
    $region18: #{tpu_custom_call.1} parent=1 // pred_check
      _
    $region19: #{tpu_custom_call.1} parent=1 // pred_check_branch
      %70 = sbr.rel (0) target = $region21
    $region20: #{tpu_custom_call.1} parent=1 // pred_region
      _
    $region21: #{tpu_custom_call.1} parent=1 // pred_fallthru
      _
    // Predicated region
    $region22: #{tpu_custom_call.1} parent=1 // pred_check
      _
    $region23: #{tpu_custom_call.1} parent=1 // pred_check_branch
      %72 = sbr.rel (0) target = $region25
    $region24: #{tpu_custom_call.1} parent=1 // pred_region
      _
    $region25: #{tpu_custom_call.1} parent=1 // pred_fallthru
      _
    // Predicated region
    $region26: #{tpu_custom_call.1} parent=1 // pred_check
      _
    $region27: #{tpu_custom_call.1} parent=1 // pred_check_branch
      %74 = sbr.rel (0) target = $region29
    $region28: #{tpu_custom_call.1} parent=1 // pred_region
      _
    $region29: #{tpu_custom_call.1} parent=1 // pred_fallthru
      _
    // Predicated region
    $region30: #{tpu_custom_call.1} parent=1 // pred_check
      _
    $region31: #{tpu_custom_call.1} parent=1 // pred_check_branch
      %76 = sbr.rel (0) target = $region33
    $region32: #{tpu_custom_call.1} parent=1 // pred_region
      _
    $region33: #{tpu_custom_call.1} parent=1 // pred_fallthru
      _
    // Predicated region
    $region34: #{tpu_custom_call.1} parent=1 // pred_check
      _
    $region35: #{tpu_custom_call.1} parent=1 // pred_check_branch
      %78 = sbr.rel (0) target = $region37
    $region36: #{tpu_custom_call.1} parent=1 // pred_region
      %80 = dma.done [#allocation3], 512
    $region37: #{tpu_custom_call.1} parent=1 // pred_fallthru
      _
    // Predicated region
    $region38: #{tpu_custom_call.1} parent=1 // pred_check
      _
    $region39: #{tpu_custom_call.1} parent=1 // pred_check_branch
      %82 = sbr.rel (0) target = $region41
    $region40: #{tpu_custom_call.1} parent=1 // pred_region
      %84 = dma.done [#allocation6], 3072
    $region41: #{tpu_custom_call.1} parent=1 // pred_fallthru
      _
    // Predicated region
    $region42: #{tpu_custom_call.1} parent=1 // pred_check
      _
    $region43: #{tpu_custom_call.1} parent=1 // pred_check_branch
      %86 = sbr.rel (0) target = $region45
    $region44: #{tpu_custom_call.1} parent=1 // pred_region
      %88 = dma.done [#allocation6], 2048
    $region45: #{tpu_custom_call.1} parent=1 // pred_fallthru
      _
    // Predicated region
    $region46: #{tpu_custom_call.1} parent=1 // pred_check
      _
    $region47: #{tpu_custom_call.1} parent=1 // pred_check_branch
      %90 = sbr.rel (0) target = $region49
    $region48: #{tpu_custom_call.1} parent=1 // pred_region
      %92 = dma.done [#allocation9], 1024
    $region49: #{tpu_custom_call.1} parent=1 // pred_fallthru
      _
    %v94 = vld [vmem:[#allocation5] sm:$0xff]
    %v95 = vld [vmem:[#allocation5 + $0x8] sm:$0xf]
    %v96 = vld [vmem:[#allocation5 + $0xc] sm:$0xff]
    %v97 = vld [vmem:[#allocation5 + $0x14] sm:$0xf]
    %v98 = vld [vmem:[#allocation5 + $0x18] sm:$0xff]
    %v99 = vld [vmem:[#allocation5 + $0x20] sm:$0xf]
    %v100 = vld [vmem:[#allocation5 + $0x24] sm:$0xff]
    %v101 = vld [vmem:[#allocation5 + $0x2c] sm:$0xf]
    %v102 = vld [vmem:[#allocation5 + $0x30] sm:$0xff]
    %v103 = vld [vmem:[#allocation5 + $0x38] sm:$0xf]
    %v104 = vld [vmem:[#allocation5 + $0x3c] sm:$0xff]
    %v105 = vld [vmem:[#allocation5 + $0x44] sm:$0xf]
    %v106 = vld [vmem:[#allocation5 + $0x48] sm:$0xff]
    %v107 = vld [vmem:[#allocation5 + $0x50] sm:$0xf]
    %v108 = vld [vmem:[#allocation5 + $0x54] sm:$0xff]
    %v109 = vld [vmem:[#allocation5 + $0x5c] sm:$0xf]
    %v110 = vld [vmem:[#allocation5 + $0x60] sm:$0xff]
    %v111 = vld [vmem:[#allocation5 + $0x68] sm:$0xf]
    %v112 = vld [vmem:[#allocation5 + $0x6c] sm:$0xff]
    %v113 = vld [vmem:[#allocation5 + $0x74] sm:$0xf]
    %v114 = vld [vmem:[#allocation5 + $0x78] sm:$0xff]
    %v115 = vld [vmem:[#allocation5 + $0x80] sm:$0xf]
    %v116 = vld [vmem:[#allocation5 + $0x84] sm:$0xff]
    %v117 = vld [vmem:[#allocation5 + $0x8c] sm:$0xf]
    %v118 = vld [vmem:[#allocation5 + $0x90] sm:$0xff]
    %v119 = vld [vmem:[#allocation5 + $0x98] sm:$0xf]
    %v120 = vld [vmem:[#allocation5 + $0x9c] sm:$0xff]
    %v121 = vld [vmem:[#allocation5 + $0xa4] sm:$0xf]
    %v122 = vld [vmem:[#allocation5 + $0xa8] sm:$0xff]
    %v123 = vld [vmem:[#allocation5 + $0xb0] sm:$0xf]
    %v124 = vld [vmem:[#allocation5 + $0xb4] sm:$0xff]
    %v125 = vld [vmem:[#allocation5 + $0xbc] sm:$0xf]
    %v126 = vld [vmem:[#allocation7] sm:$0xff]
    %v127 = vld [vmem:[#allocation7 + $0x8] sm:$0xff]
    %v128 = vld [vmem:[#allocation7 + $0x10] sm:$0xff]
    %v129 = vld [vmem:[#allocation7 + $0x18] sm:$0xff]
    %v130 = vld [vmem:[#allocation7 + $0x20] sm:$0xff]
    %v131 = vld [vmem:[#allocation7 + $0x28] sm:$0xff]
    %v132 = vld [vmem:[#allocation7 + $0x30] sm:$0xff]
    %v133 = vld [vmem:[#allocation7 + $0x38] sm:$0xff]
    %v134 = vld [vmem:[#allocation7 + $0x40] sm:$0xff]
    %v135 = vld [vmem:[#allocation7 + $0x48] sm:$0xff]
    %v136 = vld [vmem:[#allocation7 + $0x50] sm:$0xff]
    %v137 = vld [vmem:[#allocation7 + $0x58] sm:$0xff]
    %v138 = vld [vmem:[#allocation7 + $0x60] sm:$0xff]
    %v139 = vld [vmem:[#allocation7 + $0x68] sm:$0xff]
    %v140 = vld [vmem:[#allocation7 + $0x70] sm:$0xff]
    %v141 = vld [vmem:[#allocation7 + $0x78] sm:$0xff]
    %v142 = vld [vmem:[#allocation8] sm:$0xf]
    %v143 = vld [vmem:[#allocation8 + $0x4] sm:$0xf]
    %v144 = vld [vmem:[#allocation8 + $0x8] sm:$0xf]
    %v145 = vld [vmem:[#allocation8 + $0xc] sm:$0xf]
    %v146 = vld [vmem:[#allocation8 + $0x10] sm:$0xf]
    %v147 = vld [vmem:[#allocation8 + $0x14] sm:$0xf]
    %v148 = vld [vmem:[#allocation8 + $0x18] sm:$0xf]
    %v149 = vld [vmem:[#allocation8 + $0x1c] sm:$0xf]
    %v150 = vld [vmem:[#allocation8 + $0x20] sm:$0xf]
    %v151 = vld [vmem:[#allocation8 + $0x24] sm:$0xf]
    %v152 = vld [vmem:[#allocation8 + $0x28] sm:$0xf]
    %v153 = vld [vmem:[#allocation8 + $0x2c] sm:$0xf]
    %v154 = vld [vmem:[#allocation8 + $0x30] sm:$0xf]
    %v155 = vld [vmem:[#allocation8 + $0x34] sm:$0xf]
    %v156 = vld [vmem:[#allocation8 + $0x38] sm:$0xf]
    %v157 = vld [vmem:[#allocation8 + $0x3c] sm:$0xf]
    %v158 = vld [vmem:[#allocation2] sm:$0xf]
    %v159 = vld [vmem:[#allocation2 + $0x4] sm:$0xf]
    %v160 = vld [vmem:[#allocation2 + $0x8] sm:$0xf]
    %v161 = vld [vmem:[#allocation2 + $0xc] sm:$0xf]
    %v162 = vld [vmem:[#allocation2 + $0x10] sm:$0xf]
    %v163 = vld [vmem:[#allocation2 + $0x14] sm:$0xf]
    %v164 = vld [vmem:[#allocation2 + $0x18] sm:$0xf]
    %v165 = vld [vmem:[#allocation2 + $0x1c] sm:$0xf]
    %v166 = vld [vmem:[%s4] sm:$0x7]
    %v168 = vperm.slane %v166, 0
    %v169 = vperm.slane %v166, 1
    %v170 = vperm.slane %v166, 2
    %v182 = vunpack.c.l.b16 %v158
    %v183 = vunpack.c.l.b16 %v159
    %v184 = vunpack.c.l.b16 %v160
    %v185 = vunpack.c.l.b16 %v161
    %v186 = vunpack.c.l.b16 %v162
    %v187 = vunpack.c.l.b16 %v163
    %v188 = vunpack.c.l.b16 %v164
    %v189 = vunpack.c.l.b16 %v165
    %v190 = vpack.c.b16 %v183, %v182
    %v191 = vpack.c.b16 %v185, %v184
    %v192 = vpack.c.b16 %v187, %v186
    %v193 = vpack.c.b16 %v189, %v188
    %v230 = vunpack.c.l.b16 %v94
    %v231 = vunpack.c.h.b16 %v94
    %v232 = vunpack.c.l.b16 %v95
    %v233 = vunpack.c.l.b16 %v96
    %v234 = vunpack.c.h.b16 %v96
    %v235 = vunpack.c.l.b16 %v97
    %v236 = vunpack.c.l.b16 %v98
    %v237 = vunpack.c.h.b16 %v98
    %v238 = vunpack.c.l.b16 %v99
    %v239 = vunpack.c.l.b16 %v100
    %v240 = vunpack.c.h.b16 %v100
    %v241 = vunpack.c.l.b16 %v101
    %v242 = vunpack.c.l.b16 %v102
    %v243 = vunpack.c.h.b16 %v102
    %v244 = vunpack.c.l.b16 %v103
    %v245 = vunpack.c.l.b16 %v104
    %v246 = vunpack.c.h.b16 %v104
    %v247 = vunpack.c.l.b16 %v105
    %v248 = vunpack.c.l.b16 %v106
    %v249 = vunpack.c.h.b16 %v106
    %v250 = vunpack.c.l.b16 %v107
    %v251 = vunpack.c.l.b16 %v108
    %v252 = vunpack.c.h.b16 %v108
    %v253 = vunpack.c.l.b16 %v109
    %v254 = vunpack.c.l.b16 %v110
    %v255 = vunpack.c.h.b16 %v110
    %v256 = vunpack.c.l.b16 %v111
    %v257 = vunpack.c.l.b16 %v112
    %v258 = vunpack.c.h.b16 %v112
    %v259 = vunpack.c.l.b16 %v113
    %v260 = vunpack.c.l.b16 %v114
    %v261 = vunpack.c.h.b16 %v114
    %v262 = vunpack.c.l.b16 %v115
    %v263 = vunpack.c.l.b16 %v116
    %v264 = vunpack.c.h.b16 %v116
    %v265 = vunpack.c.l.b16 %v117
    %v266 = vunpack.c.l.b16 %v118
    %v267 = vunpack.c.h.b16 %v118
    %v268 = vunpack.c.l.b16 %v119
    %v269 = vunpack.c.l.b16 %v120
    %v270 = vunpack.c.h.b16 %v120
    %v271 = vunpack.c.l.b16 %v121
    %v272 = vunpack.c.l.b16 %v122
    %v273 = vunpack.c.h.b16 %v122
    %v274 = vunpack.c.l.b16 %v123
    %v275 = vunpack.c.l.b16 %v124
    %v276 = vunpack.c.h.b16 %v124
    %v277 = vunpack.c.l.b16 %v125
    %v278 = vpack.c.b16 %v233, %v230
    %v279 = vpack.c.b16 %v234, %v231
    %v280 = vpack.c.b16 %v235, %v232
    %v281 = vpack.c.b16 %v239, %v236
    %v282 = vpack.c.b16 %v240, %v237
    %v283 = vpack.c.b16 %v241, %v238
    %v284 = vpack.c.b16 %v245, %v242
    %v285 = vpack.c.b16 %v246, %v243
    %v286 = vpack.c.b16 %v247, %v244
    %v287 = vpack.c.b16 %v251, %v248
    %v288 = vpack.c.b16 %v252, %v249
    %v289 = vpack.c.b16 %v253, %v250
    %v290 = vpack.c.b16 %v257, %v254
    %v291 = vpack.c.b16 %v258, %v255
    %v292 = vpack.c.b16 %v259, %v256
    %v293 = vpack.c.b16 %v263, %v260
    %v294 = vpack.c.b16 %v264, %v261
    %v295 = vpack.c.b16 %v265, %v262
    %v296 = vpack.c.b16 %v269, %v266
    %v297 = vpack.c.b16 %v270, %v267
    %v298 = vpack.c.b16 %v271, %v268
    %v299 = vpack.c.b16 %v275, %v272
    %v300 = vpack.c.b16 %v276, %v273
    %v301 = vpack.c.b16 %v277, %v274
    %326 = vmatpush.bf16.msra.mxu0 %v299
    %327 = vmatpush.bf16.msra.mxu0 %v296
    %328 = vmatpush.bf16.msra.mxu0 %v293
    %329 = vmatpush.bf16.msra.mxu0 %v290
    %330 = vmatpush.bf16.msra.mxu0 %v287
    %331 = vmatpush.bf16.msra.mxu0 %v284
    %332 = vmatpush.bf16.msra.mxu0 %v281
    %333 = vmatpush.bf16.msra.mxu0 %v278
    %334 = vmatmul.bf16.gmra.mxu0 %v190
    %v335 = vpop.f32.mrf.mxu0
    %v336 = vadd.f32 %v168, %v335
    %v337 = vpop.f32.mrf.mxu0
    %v338 = vadd.f32 %v168, %v337
    %339 = vmatmul.bf16.gmra.mxu0 %v191
    %v340 = vpop.f32.mrf.mxu0
    %v341 = vadd.f32 %v168, %v340
    %v342 = vpop.f32.mrf.mxu0
    %v343 = vadd.f32 %v168, %v342
    %344 = vmatmul.bf16.gmra.mxu0 %v192
    %v345 = vpop.f32.mrf.mxu0
    %v346 = vadd.f32 %v168, %v345
    %v347 = vpop.f32.mrf.mxu0
    %v348 = vadd.f32 %v168, %v347
    %349 = vmatmul.bf16.gmra.mxu0 %v193
    %v350 = vpop.f32.mrf.mxu0
    %v351 = vadd.f32 %v168, %v350
    %v352 = vpop.f32.mrf.mxu0
    %v353 = vadd.f32 %v168, %v352
    %354 = vdwg.mxu0
    %355 = vmatpush.bf16.msra.mxu0 %v300
    %356 = vmatpush.bf16.msra.mxu0 %v297
    %357 = vmatpush.bf16.msra.mxu0 %v294
    %358 = vmatpush.bf16.msra.mxu0 %v291
    %359 = vmatpush.bf16.msra.mxu0 %v288
    %360 = vmatpush.bf16.msra.mxu0 %v285
    %361 = vmatpush.bf16.msra.mxu0 %v282
    %362 = vmatpush.bf16.msra.mxu0 %v279
    %363 = vmatmul.bf16.gmra.mxu0 %v190
    %v364 = vpop.f32.mrf.mxu0
    %v365 = vadd.f32 %v169, %v364
    %v366 = vpop.f32.mrf.mxu0
    %v367 = vadd.f32 %v169, %v366
    %368 = vmatmul.bf16.gmra.mxu0 %v191
    %v369 = vpop.f32.mrf.mxu0
    %v370 = vadd.f32 %v169, %v369
    %v371 = vpop.f32.mrf.mxu0
    %v372 = vadd.f32 %v169, %v371
    %373 = vmatmul.bf16.gmra.mxu0 %v192
    %v374 = vpop.f32.mrf.mxu0
    %v375 = vadd.f32 %v169, %v374
    %v376 = vpop.f32.mrf.mxu0
    %v377 = vadd.f32 %v169, %v376
    %378 = vmatmul.bf16.gmra.mxu0 %v193
    %v379 = vpop.f32.mrf.mxu0
    %v380 = vadd.f32 %v169, %v379
    %v381 = vpop.f32.mrf.mxu0
    %v382 = vadd.f32 %v169, %v381
    %383 = vdwg.mxu0
    %384 = vmatpush.bf16.msra.mxu0 %v301
    %385 = vmatpush.bf16.msra.mxu0 %v298
    %386 = vmatpush.bf16.msra.mxu0 %v295
    %387 = vmatpush.bf16.msra.mxu0 %v292
    %388 = vmatpush.bf16.msra.mxu0 %v289
    %389 = vmatpush.bf16.msra.mxu0 %v286
    %390 = vmatpush.bf16.msra.mxu0 %v283
    %391 = vmatpush.bf16.msra.mxu0 %v280
    %392 = vmatmul.bf16.gmra.mxu0 %v190
    %v393 = vpop.f32.mrf.mxu0
    %v394 = vadd.f32 %v170, %v393
    %v395 = vpop.f32.mrf.mxu0
    %v396 = vadd.f32 %v170, %v395
    %397 = vmatmul.bf16.gmra.mxu0 %v191
    %v398 = vpop.f32.mrf.mxu0
    %v399 = vadd.f32 %v170, %v398
    %v400 = vpop.f32.mrf.mxu0
    %v401 = vadd.f32 %v170, %v400
    %402 = vmatmul.bf16.gmra.mxu0 %v192
    %v403 = vpop.f32.mrf.mxu0
    %v404 = vadd.f32 %v170, %v403
    %v405 = vpop.f32.mrf.mxu0
    %v406 = vadd.f32 %v170, %v405
    %407 = vmatmul.bf16.gmra.mxu0 %v193
    %v408 = vpop.f32.mrf.mxu0
    %v409 = vadd.f32 %v170, %v408
    %v410 = vpop.f32.mrf.mxu0
    %v411 = vadd.f32 %v170, %v410
    %412 = vdwg.mxu0
    %v413 = vld [vmem:[%s5] sm:$0x1]
    %v415 = vperm.slane %v413, 0
    %v433 = vunpack.c.l.b16 %v126
    %v434 = vunpack.c.h.b16 %v126
    %v435 = vunpack.c.l.b16 %v127
    %v436 = vunpack.c.h.b16 %v127
    %v437 = vunpack.c.l.b16 %v128
    %v438 = vunpack.c.h.b16 %v128
    %v439 = vunpack.c.l.b16 %v129
    %v440 = vunpack.c.h.b16 %v129
    %v441 = vunpack.c.l.b16 %v130
    %v442 = vunpack.c.h.b16 %v130
    %v443 = vunpack.c.l.b16 %v131
    %v444 = vunpack.c.h.b16 %v131
    %v445 = vunpack.c.l.b16 %v132
    %v446 = vunpack.c.h.b16 %v132
    %v447 = vunpack.c.l.b16 %v133
    %v448 = vunpack.c.h.b16 %v133
    %v449 = vunpack.c.l.b16 %v134
    %v450 = vunpack.c.h.b16 %v134
    %v451 = vunpack.c.l.b16 %v135
    %v452 = vunpack.c.h.b16 %v135
    %v453 = vunpack.c.l.b16 %v136
    %v454 = vunpack.c.h.b16 %v136
    %v455 = vunpack.c.l.b16 %v137
    %v456 = vunpack.c.h.b16 %v137
    %v457 = vunpack.c.l.b16 %v138
    %v458 = vunpack.c.h.b16 %v138
    %v459 = vunpack.c.l.b16 %v139
    %v460 = vunpack.c.h.b16 %v139
    %v461 = vunpack.c.l.b16 %v140
    %v462 = vunpack.c.h.b16 %v140
    %v463 = vunpack.c.l.b16 %v141
    %v464 = vunpack.c.h.b16 %v141
    %v465 = vpack.c.b16 %v435, %v433
    %v466 = vpack.c.b16 %v436, %v434
    %v467 = vpack.c.b16 %v439, %v437
    %v468 = vpack.c.b16 %v440, %v438
    %v469 = vpack.c.b16 %v443, %v441
    %v470 = vpack.c.b16 %v444, %v442
    %v471 = vpack.c.b16 %v447, %v445
    %v472 = vpack.c.b16 %v448, %v446
    %v473 = vpack.c.b16 %v451, %v449
    %v474 = vpack.c.b16 %v452, %v450
    %v475 = vpack.c.b16 %v455, %v453
    %v476 = vpack.c.b16 %v456, %v454
    %v477 = vpack.c.b16 %v459, %v457
    %v478 = vpack.c.b16 %v460, %v458
    %v479 = vpack.c.b16 %v463, %v461
    %v480 = vpack.c.b16 %v464, %v462
    %497 = vmatpush.bf16.msra.mxu0 %v479
    %498 = vmatpush.bf16.msra.mxu0 %v477
    %499 = vmatpush.bf16.msra.mxu0 %v475
    %500 = vmatpush.bf16.msra.mxu0 %v473
    %501 = vmatpush.bf16.msra.mxu0 %v471
    %502 = vmatpush.bf16.msra.mxu0 %v469
    %503 = vmatpush.bf16.msra.mxu0 %v467
    %504 = vmatpush.bf16.msra.mxu0 %v465
    %505 = vmatmul.bf16.gmra.mxu0 0
    %v506 = vpop.f32.mrf.mxu0
    %v507 = vadd.f32 0.0, %v506
    %v508 = vpop.f32.mrf.mxu0
    %v509 = vadd.f32 0.0, %v508
    %510 = vdwg.mxu0
    %511 = vmatpush.bf16.msra.mxu0 %v480
    %512 = vmatpush.bf16.msra.mxu0 %v478
    %513 = vmatpush.bf16.msra.mxu0 %v476
    %514 = vmatpush.bf16.msra.mxu0 %v474
    %515 = vmatpush.bf16.msra.mxu0 %v472
    %516 = vmatpush.bf16.msra.mxu0 %v470
    %517 = vmatpush.bf16.msra.mxu0 %v468
    %518 = vmatpush.bf16.msra.mxu0 %v466
    %519 = vmatmul.bf16.gmra.mxu0 0
    %v520 = vpop.f32.mrf.mxu0
    %v521 = vadd.f32 0.0, %v520
    %v522 = vpop.f32.mrf.mxu0
    %v523 = vadd.f32 0.0, %v522
    %524 = vdwg.mxu0
    %v525 = vadd.f32 %v336, %v507
    %v526 = vadd.f32 %v365, %v521
    %v527 = vadd.f32 %v338, %v509
    %v528 = vadd.f32 %v367, %v523
    %v529 = vpack.c.bf16 %v526, %v525
    %v530 = vpack.c.bf16 %v528, %v527
    %v531 = vunpack.c.l.bf16 %v529
    %v532 = vunpack.c.h.bf16 %v529
    %v533 = vunpack.c.l.bf16 %v530
    %v534 = vunpack.c.h.bf16 %v530
    %v535 = vmul.f32 %v531, 0.5
    %v536 = vmul.f32 %v532, 0.5
    %v537 = vmul.f32 %v533, 0.5
    %v538 = vmul.f32 %v534, 0.5
    %v539 = vpack.c.bf16 %v536, %v535
    %v540 = vpack.c.bf16 %v538, %v537
    %v541 = vunpack.c.l.bf16 %v539
    %v542 = vunpack.c.h.bf16 %v539
    %v543 = vunpack.c.l.bf16 %v540
    %v544 = vunpack.c.h.bf16 %v540
    %v545 = vtanh.pop %v541
    %v546 = vtanh.pop %v542
    %v547 = vtanh.pop %v543
    %v548 = vtanh.pop %v544
    %v549 = vpack.c.bf16 %v546, %v545
    %v550 = vpack.c.bf16 %v548, %v547
    %v551 = vunpack.c.l.bf16 %v549
    %v552 = vunpack.c.h.bf16 %v549
    %v553 = vunpack.c.l.bf16 %v550
    %v554 = vunpack.c.h.bf16 %v550
    %v555 = vadd.f32 %v551, 1.0
    %v556 = vadd.f32 %v552, 1.0
    %v557 = vadd.f32 %v553, 1.0
    %v558 = vadd.f32 %v554, 1.0
    %v559 = vpack.c.bf16 %v556, %v555
    %v560 = vpack.c.bf16 %v558, %v557
    %v561 = vunpack.c.l.bf16 %v559
    %v562 = vunpack.c.h.bf16 %v559
    %v563 = vunpack.c.l.bf16 %v560
    %v564 = vunpack.c.h.bf16 %v560
    %v565 = vmul.f32 %v561, 0.5
    %v566 = vmul.f32 %v562, 0.5
    %v567 = vmul.f32 %v563, 0.5
    %v568 = vmul.f32 %v564, 0.5
    %v569 = vpack.c.bf16 %v566, %v565
    %v570 = vpack.c.bf16 %v568, %v567
    %v571 = vunpack.c.l.bf16 %v569
    %v572 = vunpack.c.l.bf16 %v570
    %v575 = vrot.slane %v569, 4
    %v576 = vrot.slane %v570, 4
    %v579 = vunpack.c.l.bf16 %v575
    %v580 = vunpack.c.l.bf16 %v576
    %v597 = vunpack.c.l.b16 %v142
    %v598 = vunpack.c.l.b16 %v143
    %v599 = vunpack.c.l.b16 %v144
    %v600 = vunpack.c.l.b16 %v145
    %v601 = vunpack.c.l.b16 %v146
    %v602 = vunpack.c.l.b16 %v147
    %v603 = vunpack.c.l.b16 %v148
    %v604 = vunpack.c.l.b16 %v149
    %v605 = vunpack.c.l.b16 %v150
    %v606 = vunpack.c.l.b16 %v151
    %v607 = vunpack.c.l.b16 %v152
    %v608 = vunpack.c.l.b16 %v153
    %v609 = vunpack.c.l.b16 %v154
    %v610 = vunpack.c.l.b16 %v155
    %v611 = vunpack.c.l.b16 %v156
    %v612 = vunpack.c.l.b16 %v157
    %v613 = vpack.c.b16 %v598, %v597
    %v614 = vpack.c.b16 %v600, %v599
    %v615 = vpack.c.b16 %v602, %v601
    %v616 = vpack.c.b16 %v604, %v603
    %v617 = vpack.c.b16 %v606, %v605
    %v618 = vpack.c.b16 %v608, %v607
    %v619 = vpack.c.b16 %v610, %v609
    %v620 = vpack.c.b16 %v612, %v611
    %629 = vmatpush.bf16.msra.mxu0 %v620
    %630 = vmatpush.bf16.msra.mxu0 %v619
    %631 = vmatpush.bf16.msra.mxu0 %v618
    %632 = vmatpush.bf16.msra.mxu0 %v617
    %633 = vmatpush.bf16.msra.mxu0 %v616
    %634 = vmatpush.bf16.msra.mxu0 %v615
    %635 = vmatpush.bf16.msra.mxu0 %v614
    %636 = vmatpush.bf16.msra.mxu0 %v613
    %637 = vmatmul.bf16.gmra.mxu0 0
    %v638 = vpop.f32.mrf.mxu0
    %v639 = vadd.f32 %v415, %v638
    %v640 = vpop.f32.mrf.mxu0
    %v641 = vadd.f32 %v415, %v640
    %642 = vdwg.mxu0
    %v643 = vmul.f32 %v571, %v639
    %v644 = vmul.f32 %v572, %v641
    %v645 = vadd.f32 %v394, %v643
    %v646 = vadd.f32 %v396, %v644
    %v647 = vpack.c.bf16 %v645, %v645
    %v648 = vpack.c.bf16 %v646, %v646
    %v649 = vunpack.c.l.bf16 %v647
    %v650 = vunpack.c.l.bf16 %v648
    %v651 = vtanh.pop %v649
    %v652 = vtanh.pop %v650
    %v653 = vpack.c.bf16 %v651, %v651
    %v654 = vpack.c.bf16 %v652, %v652
    %v655 = vunpack.c.l.bf16 %v653
    %v656 = vunpack.c.l.bf16 %v654
    %v657 = vsub.f32 0.0, %v655
    %v658 = vsub.f32 0.0, %v656
    %v659 = vmul.f32 %v579, %v657
    %v660 = vmul.f32 %v580, %v658
    %v661 = vadd.f32 %v655, %v659
    %v662 = vadd.f32 %v656, %v660
    %v663 = vpack.c.bf16 %v662, %v661
    %664 = vmatpush.bf16.msra.mxu0 %v479
    %665 = vmatpush.bf16.msra.mxu0 %v477
    %666 = vmatpush.bf16.msra.mxu0 %v475
    %667 = vmatpush.bf16.msra.mxu0 %v473
    %668 = vmatpush.bf16.msra.mxu0 %v471
    %669 = vmatpush.bf16.msra.mxu0 %v469
    %670 = vmatpush.bf16.msra.mxu0 %v467
    %671 = vmatpush.bf16.msra.mxu0 %v465
    %672 = vmatmul.bf16.gmra.mxu0 %v663
    %v673 = vpop.f32.mrf.mxu0
    %v674 = vadd.f32 0.0, %v673
    %v675 = vpop.f32.mrf.mxu0
    %v676 = vadd.f32 0.0, %v675
    %677 = vdwg.mxu0
    %678 = vmatpush.bf16.msra.mxu0 %v480
    %679 = vmatpush.bf16.msra.mxu0 %v478
    %680 = vmatpush.bf16.msra.mxu0 %v476
    %681 = vmatpush.bf16.msra.mxu0 %v474
    %682 = vmatpush.bf16.msra.mxu0 %v472
    %683 = vmatpush.bf16.msra.mxu0 %v470
    %684 = vmatpush.bf16.msra.mxu0 %v468
    %685 = vmatpush.bf16.msra.mxu0 %v466
    %686 = vmatmul.bf16.gmra.mxu0 %v663
    %v687 = vpop.f32.mrf.mxu0
    %v688 = vadd.f32 0.0, %v687
    %v689 = vpop.f32.mrf.mxu0
    %v690 = vadd.f32 0.0, %v689
    %691 = vdwg.mxu0
    %v692 = vadd.f32 %v341, %v674
    %v693 = vadd.f32 %v370, %v688
    %v694 = vadd.f32 %v343, %v676
    %v695 = vadd.f32 %v372, %v690
    %v696 = vpack.c.bf16 %v693, %v692
    %v697 = vpack.c.bf16 %v695, %v694
    %v698 = vunpack.c.l.bf16 %v696
    %v699 = vunpack.c.h.bf16 %v696
    %v700 = vunpack.c.l.bf16 %v697
    %v701 = vunpack.c.h.bf16 %v697
    %v702 = vmul.f32 %v698, 0.5
    %v703 = vmul.f32 %v699, 0.5
    %v704 = vmul.f32 %v700, 0.5
    %v705 = vmul.f32 %v701, 0.5
    %v706 = vpack.c.bf16 %v703, %v702
    %v707 = vpack.c.bf16 %v705, %v704
    %v708 = vunpack.c.l.bf16 %v706
    %v709 = vunpack.c.h.bf16 %v706
    %v710 = vunpack.c.l.bf16 %v707
    %v711 = vunpack.c.h.bf16 %v707
    %v712 = vtanh.pop %v708
    %v713 = vtanh.pop %v709
    %v714 = vtanh.pop %v710
    %v715 = vtanh.pop %v711
    %v716 = vpack.c.bf16 %v713, %v712
    %v717 = vpack.c.bf16 %v715, %v714
    %v718 = vunpack.c.l.bf16 %v716
    %v719 = vunpack.c.h.bf16 %v716
    %v720 = vunpack.c.l.bf16 %v717
    %v721 = vunpack.c.h.bf16 %v717
    %v722 = vadd.f32 %v718, 1.0
    %v723 = vadd.f32 %v719, 1.0
    %v724 = vadd.f32 %v720, 1.0
    %v725 = vadd.f32 %v721, 1.0
    %v726 = vpack.c.bf16 %v723, %v722
    %v727 = vpack.c.bf16 %v725, %v724
    %v728 = vunpack.c.l.bf16 %v726
    %v729 = vunpack.c.h.bf16 %v726
    %v730 = vunpack.c.l.bf16 %v727
    %v731 = vunpack.c.h.bf16 %v727
    %v732 = vmul.f32 %v728, 0.5
    %v733 = vmul.f32 %v729, 0.5
    %v734 = vmul.f32 %v730, 0.5
    %v735 = vmul.f32 %v731, 0.5
    %v736 = vpack.c.bf16 %v733, %v732
    %v737 = vpack.c.bf16 %v735, %v734
    %v738 = vunpack.c.l.bf16 %v736
    %v739 = vunpack.c.l.bf16 %v737
    %v742 = vrot.slane %v736, 4
    %v743 = vrot.slane %v737, 4
    %v746 = vunpack.c.l.bf16 %v742
    %v747 = vunpack.c.l.bf16 %v743
    %748 = vmatpush.bf16.msra.mxu0 %v620
    %749 = vmatpush.bf16.msra.mxu0 %v619
    %750 = vmatpush.bf16.msra.mxu0 %v618
    %751 = vmatpush.bf16.msra.mxu0 %v617
    %752 = vmatpush.bf16.msra.mxu0 %v616
    %753 = vmatpush.bf16.msra.mxu0 %v615
    %754 = vmatpush.bf16.msra.mxu0 %v614
    %755 = vmatpush.bf16.msra.mxu0 %v613
    %756 = vmatmul.bf16.gmra.mxu0 %v663
    %v757 = vpop.f32.mrf.mxu0
    %v758 = vadd.f32 %v415, %v757
    %v759 = vpop.f32.mrf.mxu0
    %v760 = vadd.f32 %v415, %v759
    %761 = vdwg.mxu0
    %v762 = vmul.f32 %v738, %v758
    %v763 = vmul.f32 %v739, %v760
    %v764 = vadd.f32 %v399, %v762
    %v765 = vadd.f32 %v401, %v763
    %v766 = vpack.c.bf16 %v764, %v764
    %v767 = vpack.c.bf16 %v765, %v765
    %v768 = vunpack.c.l.bf16 %v766
    %v769 = vunpack.c.l.bf16 %v767
    %v770 = vtanh.pop %v768
    %v771 = vtanh.pop %v769
    %v772 = vpack.c.bf16 %v770, %v770
    %v773 = vpack.c.bf16 %v771, %v771
    %v774 = vunpack.c.l.bf16 %v772
    %v775 = vunpack.c.l.bf16 %v773
    %v776 = vsub.f32 %v661, %v774
    %v777 = vsub.f32 %v662, %v775
    %v778 = vmul.f32 %v746, %v776
    %v779 = vmul.f32 %v747, %v777
    %v780 = vadd.f32 %v774, %v778
    %v781 = vadd.f32 %v775, %v779
    %v782 = vpack.c.bf16 %v781, %v780
    %783 = vmatpush.bf16.msra.mxu0 %v479
    %784 = vmatpush.bf16.msra.mxu0 %v477
    %785 = vmatpush.bf16.msra.mxu0 %v475
    %786 = vmatpush.bf16.msra.mxu0 %v473
    %787 = vmatpush.bf16.msra.mxu0 %v471
    %788 = vmatpush.bf16.msra.mxu0 %v469
    %789 = vmatpush.bf16.msra.mxu0 %v467
    %790 = vmatpush.bf16.msra.mxu0 %v465
    %791 = vmatmul.bf16.gmra.mxu0 %v782
    %v792 = vpop.f32.mrf.mxu0
    %v793 = vadd.f32 0.0, %v792
    %v794 = vpop.f32.mrf.mxu0
    %v795 = vadd.f32 0.0, %v794
    %796 = vdwg.mxu0
    %797 = vmatpush.bf16.msra.mxu0 %v480
    %798 = vmatpush.bf16.msra.mxu0 %v478
    %799 = vmatpush.bf16.msra.mxu0 %v476
    %800 = vmatpush.bf16.msra.mxu0 %v474
    %801 = vmatpush.bf16.msra.mxu0 %v472
    %802 = vmatpush.bf16.msra.mxu0 %v470
    %803 = vmatpush.bf16.msra.mxu0 %v468
    %804 = vmatpush.bf16.msra.mxu0 %v466
    %805 = vmatmul.bf16.gmra.mxu0 %v782
    %v806 = vpop.f32.mrf.mxu0
    %v807 = vadd.f32 0.0, %v806
    %v808 = vpop.f32.mrf.mxu0
    %v809 = vadd.f32 0.0, %v808
    %810 = vdwg.mxu0
    %v811 = vadd.f32 %v346, %v793
    %v812 = vadd.f32 %v375, %v807
    %v813 = vadd.f32 %v348, %v795
    %v814 = vadd.f32 %v377, %v809
    %v815 = vpack.c.bf16 %v812, %v811
    %v816 = vpack.c.bf16 %v814, %v813
    %v817 = vunpack.c.l.bf16 %v815
    %v818 = vunpack.c.h.bf16 %v815
    %v819 = vunpack.c.l.bf16 %v816
    %v820 = vunpack.c.h.bf16 %v816
    %v821 = vmul.f32 %v817, 0.5
    %v822 = vmul.f32 %v818, 0.5
    %v823 = vmul.f32 %v819, 0.5
    %v824 = vmul.f32 %v820, 0.5
    %v825 = vpack.c.bf16 %v822, %v821
    %v826 = vpack.c.bf16 %v824, %v823
    %v827 = vunpack.c.l.bf16 %v825
    %v828 = vunpack.c.h.bf16 %v825
    %v829 = vunpack.c.l.bf16 %v826
    %v830 = vunpack.c.h.bf16 %v826
    %v831 = vtanh.pop %v827
    %v832 = vtanh.pop %v828
    %v833 = vtanh.pop %v829
    %v834 = vtanh.pop %v830
    %v835 = vpack.c.bf16 %v832, %v831
    %v836 = vpack.c.bf16 %v834, %v833
    %v837 = vunpack.c.l.bf16 %v835
    %v838 = vunpack.c.h.bf16 %v835
    %v839 = vunpack.c.l.bf16 %v836
    %v840 = vunpack.c.h.bf16 %v836
    %v841 = vadd.f32 %v837, 1.0
    %v842 = vadd.f32 %v838, 1.0
    %v843 = vadd.f32 %v839, 1.0
    %v844 = vadd.f32 %v840, 1.0
    %v845 = vpack.c.bf16 %v842, %v841
    %v846 = vpack.c.bf16 %v844, %v843
    %v847 = vunpack.c.l.bf16 %v845
    %v848 = vunpack.c.h.bf16 %v845
    %v849 = vunpack.c.l.bf16 %v846
    %v850 = vunpack.c.h.bf16 %v846
    %v851 = vmul.f32 %v847, 0.5
    %v852 = vmul.f32 %v848, 0.5
    %v853 = vmul.f32 %v849, 0.5
    %v854 = vmul.f32 %v850, 0.5
    %v855 = vpack.c.bf16 %v852, %v851
    %v856 = vpack.c.bf16 %v854, %v853
    %v857 = vunpack.c.l.bf16 %v855
    %v858 = vunpack.c.l.bf16 %v856
    %v861 = vrot.slane %v855, 4
    %v862 = vrot.slane %v856, 4
    %v865 = vunpack.c.l.bf16 %v861
    %v866 = vunpack.c.l.bf16 %v862
    %867 = vmatpush.bf16.msra.mxu0 %v620
    %868 = vmatpush.bf16.msra.mxu0 %v619
    %869 = vmatpush.bf16.msra.mxu0 %v618
    %870 = vmatpush.bf16.msra.mxu0 %v617
    %871 = vmatpush.bf16.msra.mxu0 %v616
    %872 = vmatpush.bf16.msra.mxu0 %v615
    %873 = vmatpush.bf16.msra.mxu0 %v614
    %874 = vmatpush.bf16.msra.mxu0 %v613
    %875 = vmatmul.bf16.gmra.mxu0 %v782
    %v876 = vpop.f32.mrf.mxu0
    %v877 = vadd.f32 %v415, %v876
    %v878 = vpop.f32.mrf.mxu0
    %v879 = vadd.f32 %v415, %v878
    %880 = vdwg.mxu0
    %v881 = vmul.f32 %v857, %v877
    %v882 = vmul.f32 %v858, %v879
    %v883 = vadd.f32 %v404, %v881
    %v884 = vadd.f32 %v406, %v882
    %v885 = vpack.c.bf16 %v883, %v883
    %v886 = vpack.c.bf16 %v884, %v884
    %v887 = vunpack.c.l.bf16 %v885
    %v888 = vunpack.c.l.bf16 %v886
    %v889 = vtanh.pop %v887
    %v890 = vtanh.pop %v888
    %v891 = vpack.c.bf16 %v889, %v889
    %v892 = vpack.c.bf16 %v890, %v890
    %v893 = vunpack.c.l.bf16 %v891
    %v894 = vunpack.c.l.bf16 %v892
    %v895 = vsub.f32 %v780, %v893
    %v896 = vsub.f32 %v781, %v894
    %v897 = vmul.f32 %v865, %v895
    %v898 = vmul.f32 %v866, %v896
    %v899 = vadd.f32 %v893, %v897
    %v900 = vadd.f32 %v894, %v898
    %v901 = vpack.c.bf16 %v900, %v899
    %902 = vmatpush.bf16.msra.mxu0 %v479
    %903 = vmatpush.bf16.msra.mxu0 %v477
    %904 = vmatpush.bf16.msra.mxu0 %v475
    %905 = vmatpush.bf16.msra.mxu0 %v473
    %906 = vmatpush.bf16.msra.mxu0 %v471
    %907 = vmatpush.bf16.msra.mxu0 %v469
    %908 = vmatpush.bf16.msra.mxu0 %v467
    %909 = vmatpush.bf16.msra.mxu0 %v465
    %910 = vmatmul.bf16.gmra.mxu0 %v901
    %v911 = vpop.f32.mrf.mxu0
    %v912 = vadd.f32 0.0, %v911
    %v913 = vpop.f32.mrf.mxu0
    %v914 = vadd.f32 0.0, %v913
    %915 = vdwg.mxu0
    %916 = vmatpush.bf16.msra.mxu0 %v480
    %917 = vmatpush.bf16.msra.mxu0 %v478
    %918 = vmatpush.bf16.msra.mxu0 %v476
    %919 = vmatpush.bf16.msra.mxu0 %v474
    %920 = vmatpush.bf16.msra.mxu0 %v472
    %921 = vmatpush.bf16.msra.mxu0 %v470
    %922 = vmatpush.bf16.msra.mxu0 %v468
    %923 = vmatpush.bf16.msra.mxu0 %v466
    %924 = vmatmul.bf16.gmra.mxu0 %v901
    %v925 = vpop.f32.mrf.mxu0
    %v926 = vadd.f32 0.0, %v925
    %v927 = vpop.f32.mrf.mxu0
    %v928 = vadd.f32 0.0, %v927
    %929 = vdwg.mxu0
    %v930 = vadd.f32 %v351, %v912
    %v931 = vadd.f32 %v380, %v926
    %v932 = vadd.f32 %v353, %v914
    %v933 = vadd.f32 %v382, %v928
    %v934 = vpack.c.bf16 %v931, %v930
    %v935 = vpack.c.bf16 %v933, %v932
    %v936 = vunpack.c.l.bf16 %v934
    %v937 = vunpack.c.h.bf16 %v934
    %v938 = vunpack.c.l.bf16 %v935
    %v939 = vunpack.c.h.bf16 %v935
    %v940 = vmul.f32 %v936, 0.5
    %v941 = vmul.f32 %v937, 0.5
    %v942 = vmul.f32 %v938, 0.5
    %v943 = vmul.f32 %v939, 0.5
    %v944 = vpack.c.bf16 %v941, %v940
    %v945 = vpack.c.bf16 %v943, %v942
    %v946 = vunpack.c.l.bf16 %v944
    %v947 = vunpack.c.h.bf16 %v944
    %v948 = vunpack.c.l.bf16 %v945
    %v949 = vunpack.c.h.bf16 %v945
    %v950 = vtanh.pop %v946
    %v951 = vtanh.pop %v947
    %v952 = vtanh.pop %v948
    %v953 = vtanh.pop %v949
    %v954 = vpack.c.bf16 %v951, %v950
    %v955 = vpack.c.bf16 %v953, %v952
    %v956 = vunpack.c.l.bf16 %v954
    %v957 = vunpack.c.h.bf16 %v954
    %v958 = vunpack.c.l.bf16 %v955
    %v959 = vunpack.c.h.bf16 %v955
    %v960 = vadd.f32 %v956, 1.0
    %v961 = vadd.f32 %v957, 1.0
    %v962 = vadd.f32 %v958, 1.0
    %v963 = vadd.f32 %v959, 1.0
    %v964 = vpack.c.bf16 %v961, %v960
    %v965 = vpack.c.bf16 %v963, %v962
    %v966 = vunpack.c.l.bf16 %v964
    %v967 = vunpack.c.h.bf16 %v964
    %v968 = vunpack.c.l.bf16 %v965
    %v969 = vunpack.c.h.bf16 %v965
    %v970 = vmul.f32 %v966, 0.5
    %v971 = vmul.f32 %v967, 0.5
    %v972 = vmul.f32 %v968, 0.5
    %v973 = vmul.f32 %v969, 0.5
    %v974 = vpack.c.bf16 %v971, %v970
    %v975 = vpack.c.bf16 %v973, %v972
    %v976 = vunpack.c.l.bf16 %v974
    %v977 = vunpack.c.l.bf16 %v975
    %v980 = vrot.slane %v974, 4
    %v981 = vrot.slane %v975, 4
    %v984 = vunpack.c.l.bf16 %v980
    %v985 = vunpack.c.l.bf16 %v981
    %986 = vmatpush.bf16.msra.mxu0 %v620
    %987 = vmatpush.bf16.msra.mxu0 %v619
    %988 = vmatpush.bf16.msra.mxu0 %v618
    %989 = vmatpush.bf16.msra.mxu0 %v617
    %990 = vmatpush.bf16.msra.mxu0 %v616
    %991 = vmatpush.bf16.msra.mxu0 %v615
    %992 = vmatpush.bf16.msra.mxu0 %v614
    %993 = vmatpush.bf16.msra.mxu0 %v613
    %994 = vmatmul.bf16.gmra.mxu0 %v901
    %v995 = vpop.f32.mrf.mxu0
    %v996 = vadd.f32 %v415, %v995
    %v997 = vpop.f32.mrf.mxu0
    %v998 = vadd.f32 %v415, %v997
    %999 = vdwg.mxu0
    %v1000 = vmul.f32 %v976, %v996
    %v1001 = vmul.f32 %v977, %v998
    %v1002 = vadd.f32 %v409, %v1000
    %v1003 = vadd.f32 %v411, %v1001
    %v1004 = vpack.c.bf16 %v1002, %v1002
    %v1005 = vpack.c.bf16 %v1003, %v1003
    %v1006 = vunpack.c.l.bf16 %v1004
    %v1007 = vunpack.c.l.bf16 %v1005
    %v1008 = vtanh.pop %v1006
    %v1009 = vtanh.pop %v1007
    %v1010 = vpack.c.bf16 %v1008, %v1008
    %v1011 = vpack.c.bf16 %v1009, %v1009
    %v1012 = vunpack.c.l.bf16 %v1010
    %v1013 = vunpack.c.l.bf16 %v1011
    %v1014 = vsub.f32 %v899, %v1012
    %v1015 = vsub.f32 %v900, %v1013
    %v1016 = vmul.f32 %v984, %v1014
    %v1017 = vmul.f32 %v985, %v1015
    %v1018 = vadd.f32 %v1012, %v1016
    %v1019 = vadd.f32 %v1013, %v1017
    %1020 = vadd.xlane.f32.xlu0 %v1018
    %v1021 = vpop.xlane.xlu0 %1020
    %1022 = vadd.xlane.f32.xlu0 %v1019
    %v1023 = vpop.xlane.xlu0 %1022
    %v1024 = vmul.f32 %v1018, %v1018
    %v1025 = vmul.f32 %v1019, %v1019
    %1026 = vadd.xlane.f32.xlu0 %v1024
    %v1027 = vpop.xlane.xlu0 %1026
    %1028 = vadd.xlane.f32.xlu0 %v1025
    %v1029 = vpop.xlane.xlu0 %1028
    %v1030 = vmul.f32 %v1021, 0.0078125
    %v1031 = vmul.f32 %v1023, 0.0078125
    %v1032 = vmul.f32 %v1027, 0.0078125
    %v1033 = vmul.f32 %v1029, 0.0078125
    %v1034 = vmul.f32 %v1030, %v1030
    %v1035 = vmul.f32 %v1031, %v1031
    %v1036 = vsub.f32 %v1032, %v1034
    %v1037 = vsub.f32 %v1033, %v1035
    %v1038 = vmax.f32 %v1036, 0.0
    %v1039 = vmax.f32 %v1037, 0.0
    %v1040 = vsub.f32 %v1018, %v1030
    %v1041 = vsub.f32 %v1019, %v1031
    %v1042 = vadd.f32 %v1038, 1e-05
    %v1043 = vadd.f32 %v1039, 1e-05
    %v1044 = vrsqrt.pop %v1042
    %v1045 = vmul.f32 %v1044, %v1042
    %v1046 = vmul.f32 %v1045, %v1044
    %v1047 = vmul.f32 0.5, %v1046
    %v1048 = vsub.f32 1.5, %v1047
    %v1049 = vmul.f32 %v1044, %v1048
    %vm1050 = vweird.f32 %v1042
    %vm1051 = vweird.f32 %v1044
    %vm1052 = vmor %vm1050, %vm1051
    %v1053 = vsel %vm1052, %v1044, %v1049
    %v1054 = vrsqrt.pop %v1043
    %v1055 = vmul.f32 %v1054, %v1043
    %v1056 = vmul.f32 %v1055, %v1054
    %v1057 = vmul.f32 0.5, %v1056
    %v1058 = vsub.f32 1.5, %v1057
    %v1059 = vmul.f32 %v1054, %v1058
    %vm1060 = vweird.f32 %v1043
    %vm1061 = vweird.f32 %v1054
    %vm1062 = vmor %vm1060, %vm1061
    %v1063 = vsel %vm1062, %v1054, %v1059
    %v1064 = vmul.f32 %v1040, %v1053
    %v1065 = vmul.f32 %v1041, %v1063
    %v1066 = vld [vmem:[%s6] sm:$0x1]
    %v1068 = vperm.slane %v1066, 0
    %v1070 = vmul.f32 %v1064, %v1068
    %v1071 = vmul.f32 %v1065, %v1068
    %v1072 = vld [vmem:[%s7] sm:$0x1]
    %v1074 = vperm.slane %v1072, 0
    %v1076 = vadd.f32 %v1070, %v1074
    %v1077 = vadd.f32 %v1071, %v1074
    %1078 = vst [vmem:[#allocation10] sm:$0xff] %v1076
    %1079 = vst [vmem:[#allocation10 + $0x8] sm:$0xff] %v1077
    // Predicated region
    $region50: #{tpu_custom_call.1} parent=1 // pred_check
      _
    $region51: #{tpu_custom_call.1} parent=1 // pred_check_branch
      %1081 = sbr.rel (0) target = $region53
    $region52: #{tpu_custom_call.1} parent=1 // pred_region
      %1083 = vsyncadd [#allocation4], 0
      %s1084 = sshll.u32 [#allocation10], 4
      %s1085 = int_to_ptr.vmem [resolvable:$true] %s1084
      %s1086 = sshll.u32 %s8, 4
      %s1087 = int_to_ptr.hbm [resolvable:$true] %s1086
      %1092 = dma.vmem_to_hbm [thread:$0]  %s1085, 256, %s1087, [#allocation4], 128, 128, 8
    $region53: #{tpu_custom_call.1} parent=1 // pred_fallthru
      _
    // Predicated region
    $region54: #{tpu_custom_call.1} parent=1 // pred_check
      _
    $region55: #{tpu_custom_call.1} parent=1 // pred_check_branch
      %1094 = sbr.rel (0) target = $region57
    $region56: #{tpu_custom_call.1} parent=1 // pred_region
      %1096 = dma.done [#allocation4], 256
    $region57: #{tpu_custom_call.1} parent=1 // pred_fallthru
      _
    %1097 = vsyncpa [#allocation3], 1
    %1098 = vsyncpa [#allocation6], 1
    %1099 = vsyncpa [#allocation9], 1
    %1100 = vsyncpa [#allocation4], 1

</llo_original>
